<compile_context>
chip_gen: v7x
topology: tpu7x:2x2x1
jax: 0.10.0
libtpu: 0.0.40
codegen_flags: <defaults>
</compile_context>

<pallas_src>
import jax
import jax.numpy as jnp
from jax.experimental import pallas as pl
from jax.experimental.pallas import tpu as pltpu


def _round_up(n: int, m: int) -> int:
    return ((n + m - 1) // m) * m


def _mlp_kernel(x_ref, w1_ref, b1_ref, w2_ref, b2_ref, w3d_ref, b3d_ref, o_ref):
    # bf16 operands for the MXU, f32 accumulation.
    x = x_ref[...].astype(jnp.bfloat16)

    # fc1 + ReLU
    h1 = jnp.dot(x, w1_ref[...], preferred_element_type=jnp.float32) + b1_ref[...]
    h1 = jnp.maximum(h1, 0.0).astype(jnp.bfloat16)

    # fc2 + ReLU
    h2 = jnp.dot(h1, w2_ref[...], preferred_element_type=jnp.float32) + b2_ref[...]
    h2 = jnp.maximum(h2, 0.0).astype(jnp.bfloat16)

    # Folded fc3: only the logit-difference column is needed for 2-class
    # softmax.  d = logits[:,1] - logits[:,0].
    d = jnp.dot(h2, w3d_ref[...], preferred_element_type=jnp.float32) + b3d_ref[...]

    # softmax([l0, l1]) == [1 - sigmoid(d), sigmoid(d)].  Stable: exp(-d)
    # overflowing to inf gives p1 -> 0 exactly (no NaN).
    p1 = 1.0 / (1.0 + jnp.exp(-d))                    # (TB, 1)
    o_ref[:, 0:1] = (1.0 - p1).astype(o_ref.dtype)
    o_ref[:, 1:2] = p1.astype(o_ref.dtype)


def monomodal_forward(x, params, *, block_rows=8192):
    """x: [B, 160] float32 -> [B, 2] float32 (softmax probabilities)."""
    w1, b1, w2, b2, w3, b3 = params
    B, F = x.shape
    H1, H2 = w1.shape[1], w2.shape[1]

    # bf16 matmul operands (f32 accumulation in-kernel); biases stay f32.
    w1b = w1.astype(jnp.bfloat16)
    w2b = w2.astype(jnp.bfloat16)
    # fc3 folded to the logit-difference column.
    w3d = (w3[:, 1:2] - w3[:, 0:1]).astype(jnp.bfloat16)   # (H2, 1)
    b3d = (b3[:, 1:2] - b3[:, 0:1]).astype(jnp.float32)    # (1, 1)

    # --- Batch tile selection ------------------------------------------------
    # Cap at 8192 rows: double-buffered f32 x is 10 MiB there, ~17 MiB with
    # intermediates -- fine everywhere with the explicit vmem limit below.
    TB = min(int(block_rows), 8192, _round_up(B, 8))
    # v7x megacore: once the batch is big enough, keep >= 4 tiles so both
    # TensorCores get work and the input pipeline keeps depth.
    quarter = _round_up(pl.cdiv(B, 4), 8)
    if quarter >= 512:
        TB = min(TB, quarter)
    TB = max(8, _round_up(TB, 8))
    n_tiles = pl.cdiv(B, TB)          # last block may be partial (masked store)

    # Explicit scoped-VMEM budget (v5e defaults to only 16 MiB).
    vmem_bytes = (
        2 * TB * F * 4                       # double-buffered x tiles (f32)
        + 2 * TB * 2 * 4                     # double-buffered output tiles
        + TB * (F * 2 + (H1 + H2) * 6 + 16)  # bf16 x + h1/h2 (f32+bf16) + d/p1
        + (1 << 20)                          # weights/biases + slack
    )
    vmem_limit = int(min(max(vmem_bytes * 3 // 2, 16 << 20), 48 << 20))

    full = lambda arr: pl.BlockSpec(arr.shape, lambda i: (0,) * arr.ndim)

    out = pl.pallas_call(
        _mlp_kernel,
        out_shape=jax.ShapeDtypeStruct((B, 2), jnp.float32),
        grid=(n_tiles,),
        in_specs=[
            pl.BlockSpec((TB, F), lambda i: (i, 0)),   # x: streamed per tile
            full(w1b), full(b1),                       # weights: VMEM-resident
            full(w2b), full(b2),
            full(w3d), full(b3d),
        ],
        out_specs=pl.BlockSpec((TB, 2), lambda i: (i, 0)),
        compiler_params=pltpu.CompilerParams(
            dimension_semantics=("parallel",),
            vmem_limit_bytes=vmem_limit,
        ),
    )(x, w1b, b1, w2b, b2, w3d, b3d)
    return out


def init_params(key):
    """Deterministic init mirroring nn.Linear default (uniform +-1/sqrt(fan_in)).

    Weights are stored transposed relative to PyTorch ([in, out]) so the
    kernel uses x @ W directly.  Biases are kept 2-D (1, out).
    """
    dims = [(160, 32), (32, 16), (16, 2)]
    params = []
    for fan_in, fan_out in dims:
        key, kw, kb = jax.random.split(key, 3)
        bound = 1.0 / jnp.sqrt(float(fan_in))
        w = jax.random.uniform(kw, (fan_in, fan_out), jnp.float32, -bound, bound)
        b = jax.random.uniform(kb, (1, fan_out), jnp.float32, -bound, bound)
        params += [w, b]
    return tuple(params)


if __name__ == "__main__":
    key = jax.random.PRNGKey(0)
    key, kx = jax.random.split(key)
    params = init_params(key)
    w1, b1, w2, b2, w3, b3 = params

    def ref_fn(xx):
        h1 = jnp.maximum(xx @ w1 + b1, 0.0)
        h2 = jnp.maximum(h1 @ w2 + b2, 0.0)
        return jax.nn.softmax(h2 @ w3 + b3, axis=1)

    # bf16 MXU operands -> loosen tolerance vs the f32 reference.
    TOL = 2e-2

    # 1) Small case from the spec (B=8): single tile.
    B = 8
    x = jax.random.normal(kx, (B, 160), dtype=jnp.float32)
    out = jax.block_until_ready(monomodal_forward(x, params))
    ref = ref_fn(x)
    assert out.shape == (B, 2)
    assert jnp.allclose(out, ref, atol=TOL, rtol=TOL)
    assert jnp.allclose(jnp.sum(out, axis=1), 1.0, atol=1e-6)

    # 2) Ragged batch, tiny tile: multi-tile grid with a masked partial last block.
    B2 = 20
    x2 = jax.random.normal(jax.random.PRNGKey(1), (B2, 160), dtype=jnp.float32)
    out2 = jax.block_until_ready(monomodal_forward(x2, params, block_rows=8))
    ref2 = ref_fn(x2)
    assert out2.shape == (B2, 2)
    assert jnp.allclose(out2, ref2, atol=TOL, rtol=TOL)

    # 3) Medium ragged batch with default tiling: exercises the >=4-tile clamp
    #    and a partial final block, no input padding.
    B3 = 2500
    x3 = jax.random.normal(jax.random.PRNGKey(2), (B3, 160), dtype=jnp.float32)
    out3 = jax.block_until_ready(monomodal_forward(x3, params))
    ref3 = ref_fn(x3)
    assert out3.shape == (B3, 2)
    assert jnp.allclose(out3, ref3, atol=TOL, rtol=TOL)
    assert jnp.allclose(jnp.sum(out3, axis=1), 1.0, atol=1e-6)

    print("KERNEL_OK")
</pallas_src>

<mosaic_0001>
module attributes {stable_mosaic.version = 11 : i64} {
  func.func @_mlp_kernel(%arg0: i32, %arg1: memref<8x160xf32, #tpu.memory_space<vmem>>, %arg2: memref<160x32xbf16, #tpu.memory_space<vmem>>, %arg3: memref<1x32xf32, #tpu.memory_space<vmem>>, %arg4: memref<32x16xbf16, #tpu.memory_space<vmem>>, %arg5: memref<1x16xf32, #tpu.memory_space<vmem>>, %arg6: memref<16x1xbf16, #tpu.memory_space<vmem>>, %arg7: memref<1x1xf32, #tpu.memory_space<vmem>>, %arg8: memref<8x2xf32, #tpu.memory_space<vmem>>) attributes {dimension_semantics = [#tpu.dimension_semantics<parallel>], iteration_bounds = array<i64: 1>, scalar_prefetch = 0 : i64, scratch_operands = 0 : i64, tpu.core_type = #tpu.core_type<tc>, window_params = [{transform_indices = @transform_0, window_bounds = array<i64: 8, 160>}, {pipeline_mode = #tpu.pipeline_mode<synchronous>, transform_indices = @transform_1, window_bounds = array<i64: 160, 32>}, {pipeline_mode = #tpu.pipeline_mode<synchronous>, transform_indices = @transform_2, window_bounds = array<i64: 1, 32>}, {pipeline_mode = #tpu.pipeline_mode<synchronous>, transform_indices = @transform_3, window_bounds = array<i64: 32, 16>}, {pipeline_mode = #tpu.pipeline_mode<synchronous>, transform_indices = @transform_4, window_bounds = array<i64: 1, 16>}, {pipeline_mode = #tpu.pipeline_mode<synchronous>, transform_indices = @transform_5, window_bounds = array<i64: 16, 1>}, {pipeline_mode = #tpu.pipeline_mode<synchronous>, transform_indices = @transform_6, window_bounds = array<i64: 1, 1>}, {transform_indices = @transform_7, window_bounds = array<i64: 8, 2>}]} {
    %c0 = arith.constant 0 : index
    %c0_0 = arith.constant 0 : index
    %0 = vector.load %arg1[%c0, %c0_0] : memref<8x160xf32, #tpu.memory_space<vmem>>, vector<8x160xf32>
    %1 = arith.truncf %0 : vector<8x160xf32> to vector<8x160xbf16>
    %c0_1 = arith.constant 0 : index
    %c0_2 = arith.constant 0 : index
    %2 = vector.load %arg2[%c0_1, %c0_2] : memref<160x32xbf16, #tpu.memory_space<vmem>>, vector<160x32xbf16>
    %cst = arith.constant dense<0.000000e+00> : vector<8x32xf32>
    %3 = tpu.matmul %1, %2, %cst {dimension_numbers = #tpu.dot_dimension_numbers<[1], [0], [0], [1], [0, 0, 1, 1], [], []>} : vector<8x160xbf16>, vector<160x32xbf16>, vector<8x32xf32> -> vector<8x32xf32>
    %c0_3 = arith.constant 0 : index
    %c0_4 = arith.constant 0 : index
    %4 = vector.load %arg3[%c0_3, %c0_4] : memref<1x32xf32, #tpu.memory_space<vmem>>, vector<1x32xf32>
    %5 = vector.broadcast %4 : vector<1x32xf32> to vector<8x32xf32>
    %6 = arith.addf %3, %5 : vector<8x32xf32>
    %cst_5 = arith.constant 0.000000e+00 : f32
    %7 = vector.broadcast %cst_5 : f32 to vector<8x32xf32>
    %8 = arith.maximumf %6, %7 : vector<8x32xf32>
    %9 = arith.truncf %8 : vector<8x32xf32> to vector<8x32xbf16>
    %c0_6 = arith.constant 0 : index
    %c0_7 = arith.constant 0 : index
    %10 = vector.load %arg4[%c0_6, %c0_7] : memref<32x16xbf16, #tpu.memory_space<vmem>>, vector<32x16xbf16>
    %cst_8 = arith.constant dense<0.000000e+00> : vector<8x16xf32>
    %11 = tpu.matmul %9, %10, %cst_8 {dimension_numbers = #tpu.dot_dimension_numbers<[1], [0], [0], [1], [0, 0, 1, 1], [], []>} : vector<8x32xbf16>, vector<32x16xbf16>, vector<8x16xf32> -> vector<8x16xf32>
    %c0_9 = arith.constant 0 : index
    %c0_10 = arith.constant 0 : index
    %12 = vector.load %arg5[%c0_9, %c0_10] : memref<1x16xf32, #tpu.memory_space<vmem>>, vector<1x16xf32>
    %13 = vector.broadcast %12 : vector<1x16xf32> to vector<8x16xf32>
    %14 = arith.addf %11, %13 : vector<8x16xf32>
    %cst_11 = arith.constant 0.000000e+00 : f32
    %15 = vector.broadcast %cst_11 : f32 to vector<8x16xf32>
    %16 = arith.maximumf %14, %15 : vector<8x16xf32>
    %17 = arith.truncf %16 : vector<8x16xf32> to vector<8x16xbf16>
    %c0_12 = arith.constant 0 : index
    %c0_13 = arith.constant 0 : index
    %18 = vector.load %arg6[%c0_12, %c0_13] : memref<16x1xbf16, #tpu.memory_space<vmem>>, vector<16x1xbf16>
    %cst_14 = arith.constant dense<0.000000e+00> : vector<8x1xf32>
    %19 = tpu.matmul %17, %18, %cst_14 {dimension_numbers = #tpu.dot_dimension_numbers<[1], [0], [0], [1], [0, 0, 1, 1], [], []>} : vector<8x16xbf16>, vector<16x1xbf16>, vector<8x1xf32> -> vector<8x1xf32>
    %c0_15 = arith.constant 0 : index
    %c0_16 = arith.constant 0 : index
    %20 = vector.load %arg7[%c0_15, %c0_16] : memref<1x1xf32, #tpu.memory_space<vmem>>, vector<1x1xf32>
    %21 = vector.broadcast %20 : vector<1x1xf32> to vector<8x1xf32>
    %22 = arith.addf %19, %21 : vector<8x1xf32>
    %cst_17 = arith.constant 0.000000e+00 : f32
    %23 = vector.broadcast %cst_17 : f32 to vector<8x1xf32>
    %24 = arith.subf %23, %22 : vector<8x1xf32>
    %25 = math.exp %24 : vector<8x1xf32>
    %cst_18 = arith.constant 1.000000e+00 : f32
    %26 = vector.broadcast %cst_18 : f32 to vector<8x1xf32>
    %27 = arith.addf %26, %25 : vector<8x1xf32>
    %cst_19 = arith.constant 1.000000e+00 : f32
    %28 = vector.broadcast %cst_19 : f32 to vector<8x1xf32>
    %29 = arith.divf %28, %27 : vector<8x1xf32>
    %cst_20 = arith.constant 1.000000e+00 : f32
    %30 = vector.broadcast %cst_20 : f32 to vector<8x1xf32>
    %31 = arith.subf %30, %29 : vector<8x1xf32>
    %c0_21 = arith.constant 0 : index
    %c0_22 = arith.constant 0 : index
    %32 = vector.load %arg8[%c0_21, %c0_22] : memref<8x2xf32, #tpu.memory_space<vmem>>, vector<8x1xf32>
    tpu.vector_store %arg8[%c0_21, %c0_22], %31 {strides = array<i32>} : memref<8x2xf32, #tpu.memory_space<vmem>>, vector<8x1xf32>,
    %c0_23 = arith.constant 0 : index
    %c1 = arith.constant 1 : index
    %33 = vector.load %arg8[%c0_23, %c1] : memref<8x2xf32, #tpu.memory_space<vmem>>, vector<8x1xf32>
    tpu.vector_store %arg8[%c0_23, %c1], %29 {strides = array<i32>} : memref<8x2xf32, #tpu.memory_space<vmem>>, vector<8x1xf32>,
    return
  }
  func.func @transform_0(%arg0: i32) -> (i32, i32) {
    %c0_i32 = arith.constant 0 : i32
    %c0_i32_0 = arith.constant 0 : i32
    return %arg0, %c0_i32 : i32, i32
  }
  func.func @transform_1(%arg0: i32) -> (i32, i32) {
    %c0_i32 = arith.constant 0 : i32
    %c0_i32_0 = arith.constant 0 : i32
    %c0_i32_1 = arith.constant 0 : i32
    return %c0_i32, %c0_i32_0 : i32, i32
  }
  func.func @transform_2(%arg0: i32) -> (i32, i32) {
    %c0_i32 = arith.constant 0 : i32
    %c0_i32_0 = arith.constant 0 : i32
    %c0_i32_1 = arith.constant 0 : i32
    return %c0_i32, %c0_i32_0 : i32, i32
  }
  func.func @transform_3(%arg0: i32) -> (i32, i32) {
    %c0_i32 = arith.constant 0 : i32
    %c0_i32_0 = arith.constant 0 : i32
    %c0_i32_1 = arith.constant 0 : i32
    return %c0_i32, %c0_i32_0 : i32, i32
  }
  func.func @transform_4(%arg0: i32) -> (i32, i32) {
    %c0_i32 = arith.constant 0 : i32
    %c0_i32_0 = arith.constant 0 : i32
    %c0_i32_1 = arith.constant 0 : i32
    return %c0_i32, %c0_i32_0 : i32, i32
  }
  func.func @transform_5(%arg0: i32) -> (i32, i32) {
    %c0_i32 = arith.constant 0 : i32
    %c0_i32_0 = arith.constant 0 : i32
    %c0_i32_1 = arith.constant 0 : i32
    return %c0_i32, %c0_i32_0 : i32, i32
  }
  func.func @transform_6(%arg0: i32) -> (i32, i32) {
    %c0_i32 = arith.constant 0 : i32
    %c0_i32_0 = arith.constant 0 : i32
    %c0_i32_1 = arith.constant 0 : i32
    return %c0_i32, %c0_i32_0 : i32, i32
  }
  func.func @transform_7(%arg0: i32) -> (i32, i32) {
    %c0_i32 = arith.constant 0 : i32
    %c0_i32_0 = arith.constant 0 : i32
    return %arg0, %c0_i32 : i32, i32
  }
}

</mosaic_0001>

<llo_original>
// kernel: tpu_custom_call.1
$region0: #{tpu_custom_call.1}
  #allocation0 [shape = 'u32[]', space=smem, size = 0x4, offset = 0x4, fixed_abs, tag = 'smem constant byte address 0x4 - core index']
  #allocation1 [shape = 'u32[144,128]{1,0:T(1,128)}', space=vmem, size = 0x12000, scoped, tag = 'internal scratch']
  #allocation2 [shape = 'f32[1,1]{1,0:T(1,128)S(1)}', space=vmem, size = 0x200, scoped, tag = 'scoped memory for tpu_custom_call.1']
  %s0 = inlined_call_operand.vmem [shape: f32[8,160], index: 0, kind: input, shape index: {}]
  %s1 = inlined_call_operand.vmem [shape: bf16[160,32], index: 1, kind: input, shape index: {}]
  %s2 = inlined_call_operand.vmem [shape: f32[1,32], index: 2, kind: input, shape index: {}]
  %s3 = inlined_call_operand.vmem [shape: bf16[32,16], index: 3, kind: input, shape index: {}]
  %s4 = inlined_call_operand.vmem [shape: f32[1,16], index: 4, kind: input, shape index: {}]
  %s5 = inlined_call_operand.vmem [shape: bf16[16,1], index: 5, kind: input, shape index: {}]
  %s6 = inlined_call_operand.<no memory space> [shape: f32[1,1], index: 6, kind: input, shape index: {}]
  %s7 = inlined_call_operand.vmem [shape: f32[8,2], index: 7, kind: output, shape index: {}]
  %s8 = sld [smem:[#allocation0]]
  $region38: #{tpu_custom_call.1} parent=0
    _
  %s10 = ssub.s32 1, %s8
  %s11 = scalar_select 0, %s10, %s8
  %v12 = vstv %s6
  %13 = vst [vmem:[#allocation2] sm:$0x1] %v12
  // Predicated region
  $region2: #{tpu_custom_call.1} parent=0 // pred_check
    _
  $region3: #{tpu_custom_call.1} parent=0 // pred_check_branch
    %15 = sbr.rel (0) target = $region5
  $region4: #{tpu_custom_call.1} parent=0 // pred_region
    _
  $region5: #{tpu_custom_call.1} parent=0 // pred_fallthru
    _
  // Predicated region
  $region6: #{tpu_custom_call.1} parent=0 // pred_check
    _
  $region7: #{tpu_custom_call.1} parent=0 // pred_check_branch
    %17 = sbr.rel (0) target = $region9
  $region8: #{tpu_custom_call.1} parent=0 // pred_region
    _
  $region9: #{tpu_custom_call.1} parent=0 // pred_fallthru
    _
  // Predicated region
  $region10: #{tpu_custom_call.1} parent=0 // pred_check
    _
  $region11: #{tpu_custom_call.1} parent=0 // pred_check_branch
    %19 = sbr.rel (0) target = $region13
  $region12: #{tpu_custom_call.1} parent=0 // pred_region
    _
  $region13: #{tpu_custom_call.1} parent=0 // pred_fallthru
    _
  // Predicated region
  $region14: #{tpu_custom_call.1} parent=0 // pred_check
    _
  $region15: #{tpu_custom_call.1} parent=0 // pred_check_branch
    %21 = sbr.rel (0) target = $region17
  $region16: #{tpu_custom_call.1} parent=0 // pred_region
    _
  $region17: #{tpu_custom_call.1} parent=0 // pred_fallthru
    _
  // Predicated region
  $region18: #{tpu_custom_call.1} parent=0 // pred_check
    _
  $region19: #{tpu_custom_call.1} parent=0 // pred_check_branch
    %23 = sbr.rel (0) target = $region21
  $region20: #{tpu_custom_call.1} parent=0 // pred_region
    _
  $region21: #{tpu_custom_call.1} parent=0 // pred_fallthru
    _
  // Predicated region
  $region22: #{tpu_custom_call.1} parent=0 // pred_check
    _
  $region23: #{tpu_custom_call.1} parent=0 // pred_check_branch
    %25 = sbr.rel (0) target = $region25
  $region24: #{tpu_custom_call.1} parent=0 // pred_region
    _
  $region25: #{tpu_custom_call.1} parent=0 // pred_fallthru
    _
  // Predicated region
  $region26: #{tpu_custom_call.1} parent=0 // pred_check
    _
  $region27: #{tpu_custom_call.1} parent=0 // pred_check_branch
    %27 = sbr.rel (0) target = $region29
  $region28: #{tpu_custom_call.1} parent=0 // pred_region
    _
  $region29: #{tpu_custom_call.1} parent=0 // pred_fallthru
    _
  %v29 = vld [vmem:[%s0] sm:$0xff]
  %v30 = vld [vmem:[%s0 + $0x8] sm:$0xff]
  %v31 = vpack.c.bf16 %v29, %v29
  %v32 = vpack.c.bf16 %v30, %v30
  %v33 = vld [vmem:[%s1] sm:$0xf]
  %v34 = vld [vmem:[%s1 + $0x4] sm:$0xf]
  %v35 = vld [vmem:[%s1 + $0x8] sm:$0xf]
  %v36 = vld [vmem:[%s1 + $0xc] sm:$0xf]
  %v37 = vld [vmem:[%s1 + $0x10] sm:$0xf]
  %v38 = vld [vmem:[%s1 + $0x14] sm:$0xf]
  %v39 = vld [vmem:[%s1 + $0x18] sm:$0xf]
  %v40 = vld [vmem:[%s1 + $0x1c] sm:$0xf]
  %v41 = vld [vmem:[%s1 + $0x20] sm:$0xf]
  %v42 = vld [vmem:[%s1 + $0x24] sm:$0xf]
  %v43 = vld [vmem:[%s1 + $0x28] sm:$0xf]
  %v44 = vld [vmem:[%s1 + $0x2c] sm:$0xf]
  %v45 = vld [vmem:[%s1 + $0x30] sm:$0xf]
  %v46 = vld [vmem:[%s1 + $0x34] sm:$0xf]
  %v47 = vld [vmem:[%s1 + $0x38] sm:$0xf]
  %v48 = vld [vmem:[%s1 + $0x3c] sm:$0xf]
  %v49 = vld [vmem:[%s1 + $0x40] sm:$0xf]
  %v50 = vld [vmem:[%s1 + $0x44] sm:$0xf]
  %v51 = vld [vmem:[%s1 + $0x48] sm:$0xf]
  %v52 = vld [vmem:[%s1 + $0x4c] sm:$0xf]
  %v53 = vld [vmem:[%s2] sm:$0x1]
  %v55 = vlaneseq
  %v56 = vshrl.u32 %v55, 7
  %v57 = vsub.s32 0, %v56
  %v58 = vrot.slane %v53, %v57
  %v80 = vunpack.c.l.b16 %v33
  %v81 = vunpack.c.l.b16 %v34
  %v82 = vunpack.c.l.b16 %v35
  %v83 = vunpack.c.l.b16 %v36
  %v84 = vunpack.c.l.b16 %v37
  %v85 = vunpack.c.l.b16 %v38
  %v86 = vunpack.c.l.b16 %v39
  %v87 = vunpack.c.l.b16 %v40
  %v88 = vunpack.c.l.b16 %v41
  %v89 = vunpack.c.l.b16 %v42
  %v90 = vunpack.c.l.b16 %v43
  %v91 = vunpack.c.l.b16 %v44
  %v92 = vunpack.c.l.b16 %v45
  %v93 = vunpack.c.l.b16 %v46
  %v94 = vunpack.c.l.b16 %v47
  %v95 = vunpack.c.l.b16 %v48
  %v96 = vunpack.c.l.b16 %v49
  %v97 = vunpack.c.l.b16 %v50
  %v98 = vunpack.c.l.b16 %v51
  %v99 = vunpack.c.l.b16 %v52
  %v100 = vpack.c.b16 %v81, %v80
  %v101 = vpack.c.b16 %v83, %v82
  %v102 = vpack.c.b16 %v85, %v84
  %v103 = vpack.c.b16 %v87, %v86
  %v104 = vpack.c.b16 %v89, %v88
  %v105 = vpack.c.b16 %v91, %v90
  %v106 = vpack.c.b16 %v93, %v92
  %v107 = vpack.c.b16 %v95, %v94
  %v108 = vpack.c.b16 %v97, %v96
  %v109 = vpack.c.b16 %v99, %v98
  %vm120 = vcmask 261120
  %v122 = vsel %vm120, %v32, 0
  %124 = vmatprep.subr.bf16.mxu0 0
  %125 = vmatpush1.bf16.msra.mxu0 %v100
  %126 = vmatprep.subr.bf16.mxu0 0
  %127 = vmatpush1.bf16.msra.mxu0 %v101
  %128 = vmatprep.subr.bf16.mxu0 0
  %129 = vmatpush1.bf16.msra.mxu0 %v102
  %130 = vmatprep.subr.bf16.mxu0 0
  %131 = vmatpush1.bf16.msra.mxu0 %v103
  %132 = vmatprep.subr.bf16.mxu0 0
  %133 = vmatpush1.bf16.msra.mxu0 %v104
  %134 = vmatprep.subr.bf16.mxu0 0
  %135 = vmatpush1.bf16.msra.mxu0 %v105
  %136 = vmatprep.subr.bf16.mxu0 0
  %137 = vmatpush1.bf16.msra.mxu0 %v106
  %138 = vmatprep.subr.bf16.mxu0 0
  %139 = vmatpush1.bf16.msra.mxu0 %v107
  %140 = vmatprep.subr.bf16.mxu0 0
  %141 = vmatpush1.bf16.msra.mxu0 %v108
  %142 = vmatprep.subr.bf16.mxu0 0
  %143 = vmatpush1.bf16.msra.mxu0 %v109
  %144 = vmatprep.subr.bf16.mxu0 0
  %145 = vmatpush1.bf16.msra.mxu0 0
  %146 = vmatprep.subr.bf16.mxu0 0
  %147 = vmatpush1.bf16.msra.mxu0 0
  %148 = vmatprep.subr.bf16.mxu0 0
  %149 = vmatpush1.bf16.msra.mxu0 0
  %150 = vmatprep.subr.bf16.mxu0 0
  %151 = vmatpush1.bf16.msra.mxu0 0
  %152 = vmatprep.subr.bf16.mxu0 0
  %153 = vmatpush1.bf16.msra.mxu0 0
  %154 = vmatprep.subr.bf16.mxu0 0
  %155 = vmatpush1.bf16.msra.mxu0 0
  %156 = vmatprep.mubr.bf16.mxu0 %v122
  %157 = vmatmul.mubr.bf16.gmra.mrb[0].mxu0 %v31
  %v158 = vpop.f32.mrb[0].mxu0
  %v159 = vadd.f32 %v58, %v158
  %v160 = vpop.f32.mrb[0].mxu0
  %v161 = vpop.f32.mrb[0].mxu0
  %v162 = vpop.f32.mrb[0].mxu0
  %163 = vdwg.mxu0
  %v164 = vmax.f32 %v159, 0.0
  %v165 = vpack.c.bf16 %v164, %v164
  %v166 = vld [vmem:[%s3] sm:$0xf]
  %v167 = vld [vmem:[%s3 + $0x4] sm:$0xf]
  %v168 = vld [vmem:[%s3 + $0x8] sm:$0xf]
  %v169 = vld [vmem:[%s3 + $0xc] sm:$0xf]
  %v170 = vld [vmem:[%s4] sm:$0x1]
  %v172 = vlaneseq
  %v173 = vshrl.u32 %v172, 7
  %v174 = vsub.s32 0, %v173
  %v175 = vrot.slane %v170, %v174
  %v181 = vunpack.c.l.b16 %v166
  %v182 = vunpack.c.l.b16 %v167
  %v183 = vunpack.c.l.b16 %v168
  %v184 = vunpack.c.l.b16 %v169
  %v185 = vpack.c.b16 %v182, %v181
  %v186 = vpack.c.b16 %v184, %v183
  %v190 = vsel %vm120, %v165, 0
  %192 = vmatprep.subr.bf16.mxu0 0
  %193 = vmatpush1.bf16.msra.mxu0 %v185
  %194 = vmatprep.subr.bf16.mxu0 0
  %195 = vmatpush1.bf16.msra.mxu0 %v186
  %196 = vmatprep.subr.bf16.mxu0 0
  %197 = vmatpush1.bf16.msra.mxu0 0
  %198 = vmatprep.subr.bf16.mxu0 0
  %199 = vmatpush1.bf16.msra.mxu0 0
  %200 = vmatprep.subr.bf16.mxu0 0
  %201 = vmatpush1.bf16.msra.mxu0 0
  %202 = vmatprep.subr.bf16.mxu0 0
  %203 = vmatpush1.bf16.msra.mxu0 0
  %204 = vmatprep.subr.bf16.mxu0 0
  %205 = vmatpush1.bf16.msra.mxu0 0
  %206 = vmatprep.subr.bf16.mxu0 0
  %207 = vmatpush1.bf16.msra.mxu0 0
  %208 = vmatprep.subr.bf16.mxu0 0
  %209 = vmatpush1.bf16.msra.mxu0 0
  %210 = vmatprep.subr.bf16.mxu0 0
  %211 = vmatpush1.bf16.msra.mxu0 0
  %212 = vmatprep.subr.bf16.mxu0 0
  %213 = vmatpush1.bf16.msra.mxu0 0
  %214 = vmatprep.subr.bf16.mxu0 0
  %215 = vmatpush1.bf16.msra.mxu0 0
  %216 = vmatprep.subr.bf16.mxu0 0
  %217 = vmatpush1.bf16.msra.mxu0 0
  %218 = vmatprep.subr.bf16.mxu0 0
  %219 = vmatpush1.bf16.msra.mxu0 0
  %220 = vmatprep.subr.bf16.mxu0 0
  %221 = vmatpush1.bf16.msra.mxu0 0
  %222 = vmatprep.subr.bf16.mxu0 0
  %223 = vmatpush1.bf16.msra.mxu0 0
  %224 = vmatprep.mubr.bf16.mxu0 0
  %225 = vmatmul.mubr.bf16.gmra.mrb[0].mxu0 %v190
  %v226 = vpop.f32.mrb[0].mxu0
  %v227 = vadd.f32 %v175, %v226
  %v228 = vpop.f32.mrb[0].mxu0
  %v229 = vpop.f32.mrb[0].mxu0
  %v230 = vpop.f32.mrb[0].mxu0
  %231 = vdwg.mxu0
  %v232 = vmax.f32 %v227, 0.0
  %v233 = vpack.c.bf16 %v232, %v232
  %v234 = vld [vmem:[%s5] sm:$0xf]
  %v235 = vld [vmem:[%s5 + $0x4] sm:$0xf]
  %v236 = vld [vmem:[#allocation2] sm:$0x1]
  %v238 = vlaneseq
  %v239 = vshrl.u32 %v238, 7
  %v240 = vsub.s32 0, %v239
  %v241 = vrot.slane %v236, %v240
  %v245 = vunpack.c.l.b16 %v234
  %v246 = vunpack.c.l.b16 %v235
  %v247 = vpack.c.b16 %v246, %v245
  %vm249 = vcmask 130048
  %v251 = vsel %vm249, %v233, 0
  %253 = vmatprep.subr.bf16.mxu0 0
  %254 = vmatpush1.bf16.msra.mxu0 %v247
  %255 = vmatprep.subr.bf16.mxu0 0
  %256 = vmatpush1.bf16.msra.mxu0 0
  %257 = vmatprep.subr.bf16.mxu0 0
  %258 = vmatpush1.bf16.msra.mxu0 0
  %259 = vmatprep.subr.bf16.mxu0 0
  %260 = vmatpush1.bf16.msra.mxu0 0
  %261 = vmatprep.subr.bf16.mxu0 0
  %262 = vmatpush1.bf16.msra.mxu0 0
  %263 = vmatprep.subr.bf16.mxu0 0
  %264 = vmatpush1.bf16.msra.mxu0 0
  %265 = vmatprep.subr.bf16.mxu0 0
  %266 = vmatpush1.bf16.msra.mxu0 0
  %267 = vmatprep.subr.bf16.mxu0 0
  %268 = vmatpush1.bf16.msra.mxu0 0
  %269 = vmatprep.subr.bf16.mxu0 0
  %270 = vmatpush1.bf16.msra.mxu0 0
  %271 = vmatprep.subr.bf16.mxu0 0
  %272 = vmatpush1.bf16.msra.mxu0 0
  %273 = vmatprep.subr.bf16.mxu0 0
  %274 = vmatpush1.bf16.msra.mxu0 0
  %275 = vmatprep.subr.bf16.mxu0 0
  %276 = vmatpush1.bf16.msra.mxu0 0
  %277 = vmatprep.subr.bf16.mxu0 0
  %278 = vmatpush1.bf16.msra.mxu0 0
  %279 = vmatprep.subr.bf16.mxu0 0
  %280 = vmatpush1.bf16.msra.mxu0 0
  %281 = vmatprep.subr.bf16.mxu0 0
  %282 = vmatpush1.bf16.msra.mxu0 0
  %283 = vmatprep.subr.bf16.mxu0 0
  %284 = vmatpush1.bf16.msra.mxu0 0
  %285 = vmatprep.mubr.bf16.mxu0 0
  %286 = vmatmul.mubr.bf16.gmra.mrb[0].mxu0 %v251
  %v287 = vpop.f32.mrb[0].mxu0
  %v288 = vadd.f32 %v241, %v287
  %v289 = vpop.f32.mrb[0].mxu0
  %v290 = vpop.f32.mrb[0].mxu0
  %v291 = vpop.f32.mrb[0].mxu0
  %292 = vdwg.mxu0
  %v293 = vsub.f32 0.0, %v288
  %v294 = vmul.f32 %v293, 1.442695
  %v295 = vpow.pop %v294
  %v296 = vadd.f32 %v295, 1.0
  %v297 = vrcp.pop %v296
  %v298 = vmul.f32 1.0, %v297
  %v299 = vsub.f32 1.0, %v298
  %vm300 = vcmask 7168
  %301 = vst.msk [vmem:[%s7] sm:$0xff] %vm300, %v299
  %303 = vrot.lane.b32.xlu0 %v298, 1
  %v304 = vpop.permute.xlu0 %303
  %vm306 = vcmask 15368
  %307 = vst.msk [vmem:[%s7] sm:$0xff] %vm306, %v304
  // Predicated region
  $region30: #{tpu_custom_call.1} parent=0 // pred_check
    _
  $region31: #{tpu_custom_call.1} parent=0 // pred_check_branch
    %309 = sbr.rel (0) target = $region33
  $region32: #{tpu_custom_call.1} parent=0 // pred_region
    _
  $region33: #{tpu_custom_call.1} parent=0 // pred_fallthru
    _
  // Predicated region
  $region34: #{tpu_custom_call.1} parent=0 // pred_check
    _
  $region35: #{tpu_custom_call.1} parent=0 // pred_check_branch
    %311 = sbr.rel (0) target = $region37
  $region36: #{tpu_custom_call.1} parent=0 // pred_region
    _
  $region37: #{tpu_custom_call.1} parent=0 // pred_fallthru
    _

</llo_original>
